<compile_context>
chip_gen: v7x
topology: tpu7x:2x2x1
jax: 0.10.0
libtpu: 0.0.40
codegen_flags: <defaults>
</compile_context>

<pallas_src>
import functools

import jax
import jax.numpy as jnp
from jax import lax
from jax.experimental import pallas as pl
from jax.experimental.pallas import tpu as pltpu


def _round_up(x, n):
    return (x + n - 1) // n * n


def _conv3x3_kernel(x_ref, w_ref, b_ref, o_ref, *, wp, mpad):
    """One (image, row-tile) grid step.

    x_ref: (1, 1, Cin_p, Lb)    halo'd flat input tile (compute dtype)
    w_ref: (Cout_p, 9*Cin_p)    tap-major weight matrix (compute dtype)
    b_ref: (Cout_p, 1)          bias (f32)
    o_ref: (1, 1, Cout_p, Mpad) lane-dense output tile (flat spatial, f32)
    """
    xv = x_ref[0, 0]                                   # (Cin_p, Lb)

    # im2col via flat lane-offset slices: tap (dy, dx) is a shift by dy*Wp + dx.
    # All 9 slices are in bounds (Lb >= Mpad + 2*Wp + 2), have width Mpad
    # (multiple of 128 lanes) and Cin_p rows (a whole sublane tile), so the
    # concat is pure vreg stacking; the per-tap lane shifts lower to XLU
    # rotations which do not contend with the VPU/MXU slots.
    chunks = [
        xv[:, dy * wp + dx: dy * wp + dx + mpad]
        for dy in range(3)
        for dx in range(3)
    ]
    xs = jnp.concatenate(chunks, axis=0)               # (9*Cin_p, Mpad)

    # Single fused MXU matmul with f32 accumulation, f32 bias epilogue.
    acc = jnp.dot(w_ref[...], xs, preferred_element_type=jnp.float32)
    acc = acc + b_ref[...]
    o_ref[0, 0] = acc.astype(o_ref.dtype)


def conv3x3_pallas(x_nchw, weight_oihw, bias, *, use_refl=True, tile_h=None,
                   compute_dtype=jnp.bfloat16, vmem_budget_bytes=12 << 20):
    """Forward pass of Conv3x3: pad(1) (reflect or zero) + Conv2d(kernel=3).

    x_nchw:      (N, Cin, H, W)     float32
    weight_oihw: (Cout, Cin, 3, 3)  float32 (PyTorch nn.Conv2d layout)
    bias:        (Cout,)            float32
    returns:     (N, Cout, H, W)    float32
    """
    N, Cin, H, W = x_nchw.shape
    Cout = weight_oihw.shape[0]
    Wp = W + 2

    in_bytes = jnp.dtype(compute_dtype).itemsize
    sub = 8 if in_bytes == 4 else 16        # sublane tile: 8 rows f32, 16 bf16
    cin_p = _round_up(Cin, sub)             # sublane-aligned im2col chunks
    cout_p = _round_up(Cout, 8)             # f32 accumulator sublanes

    # ---- row-tile selection (VMEM-budgeted; whole image when it fits) -------
    def tile_params(th):
        m = th * Wp                                   # real output lanes / tile
        mpad = _round_up(m + 2, 128)                  # lane-dense acc/out width
        lb = _round_up(mpad + 2 * Wp + 2, 128)        # input lanes incl. halo
        need = ((2 * cin_p * lb + 9 * cin_p * mpad) * in_bytes   # x blocks + im2col
                + 2 * cout_p * mpad * 4                          # out blocks (f32)
                + 2 * cout_p * 9 * cin_p * in_bytes              # weights
                + cout_p * 4 * 2)                                # bias
        return m, mpad, lb, need

    if tile_h is None:
        th = 1
        for cand in range(H, 0, -1):
            if H % cand == 0 and tile_params(cand)[3] <= vmem_budget_bytes:
                th = cand
                break
    else:
        th = tile_h if (0 < tile_h <= H and H % tile_h == 0) else H
    n_tiles = H // th
    m, mpad, lb, _ = tile_params(th)

    # ---- wrapper layout glue (one pad pass + free reshapes) ------------------
    mode = "reflect" if use_refl else "constant"
    x_sp = jnp.pad(x_nchw, ((0, 0), (0, 0), (1, 1), (1, 1)), mode=mode)
    if cin_p != Cin:
        x_sp = jnp.pad(x_sp, ((0, 0), (0, cin_p - Cin), (0, 0), (0, 0)))
    P = (H + 2) * Wp
    x_flat = x_sp.reshape(N, cin_p, P)
    p_need = (n_tiles - 1) * m + lb
    x_flat = jnp.pad(x_flat, ((0, 0), (0, 0), (0, p_need - P)))
    # Halo'd, lane-padded row tiles: (N, n_tiles, Cin_p, Lb).  For tile_h == H
    # (the default at small images) this is one slab per image — no duplication.
    x_tiled = jnp.stack(
        [x_flat[:, :, i * m: i * m + lb] for i in range(n_tiles)], axis=1
    ).astype(compute_dtype)

    # (Cout, Cin, 3, 3) -> (Cout_p, 9*Cin_p), tap-major (dy, dx, ci) to match
    # the in-kernel im2col chunk order.
    w = weight_oihw
    if cout_p != Cout or cin_p != Cin:
        w = jnp.pad(w, ((0, cout_p - Cout), (0, cin_p - Cin), (0, 0), (0, 0)))
    w_mat = jnp.transpose(w, (0, 2, 3, 1)).reshape(cout_p, 9 * cin_p)
    w_mat = w_mat.astype(compute_dtype)
    b_col = jnp.pad(bias, (0, cout_p - Cout)).reshape(cout_p, 1).astype(jnp.float32)

    kernel = functools.partial(_conv3x3_kernel, wp=Wp, mpad=mpad)

    out4 = pl.pallas_call(
        kernel,
        out_shape=jax.ShapeDtypeStruct((N, n_tiles, cout_p, mpad), jnp.float32),
        grid_spec=pltpu.PrefetchScalarGridSpec(
            num_scalar_prefetch=0,
            grid=(N, n_tiles),
            in_specs=[
                # Auto-pipelined halo'd input tile.
                pl.BlockSpec((1, 1, cin_p, lb), lambda n, i: (n, i, 0, 0)),
                # Grid-invariant weights / bias (same block every step -> the
                # pipeline does not re-fetch them; tiny at these channel counts).
                pl.BlockSpec((cout_p, 9 * cin_p), lambda n, i: (0, 0)),
                pl.BlockSpec((cout_p, 1), lambda n, i: (0, 0)),
            ],
            out_specs=pl.BlockSpec((1, 1, cout_p, mpad), lambda n, i: (n, i, 0, 0)),
        ),
        compiler_params=pltpu.CompilerParams(
            # Both axes are independent (each output block written once), so the
            # v7x megacore can shard either the batch or the row-tile axis.
            dimension_semantics=("parallel", "parallel"),
            vmem_limit_bytes=32 * 1024 * 1024,
        ),
    )(x_tiled, w_mat, b_col)

    # (N, nT, Cout_p, Mpad) -> (N, Cout, H, W): drop channel/lane padding and the
    # 2 wrap-around columns per row, free reshapes + one small de-tiling transpose.
    out = out4[:, :, :Cout, :m].reshape(N, n_tiles, Cout, th, Wp)
    out = jnp.transpose(out, (0, 2, 1, 3, 4)).reshape(N, Cout, H, Wp)
    return out[:, :, :, :W]


def _reference_conv3x3(x_nchw, weight_oihw, bias, *, use_refl=True):
    # Pure-JAX reference (lax.conv) for correctness checking.
    mode = "reflect" if use_refl else "constant"
    x_pad = jnp.pad(x_nchw, ((0, 0), (0, 0), (1, 1), (1, 1)), mode=mode)
    out = lax.conv_general_dilated(
        x_pad, weight_oihw,
        window_strides=(1, 1), padding="VALID",
        dimension_numbers=("NCHW", "OIHW", "NCHW"),
    )
    return out + bias[None, :, None, None]


if __name__ == "__main__":
    # Small shapes consistent with the module: N=2, Cin=4, Cout=8, H=W=16.
    N, Cin, Cout, H, W = 2, 4, 8, 16, 16

    key = jax.random.PRNGKey(0)
    kx, kw, kb = jax.random.split(key, 3)

    x = jax.random.normal(kx, (N, Cin, H, W), dtype=jnp.float32)
    # Deterministic synthetic parameters in PyTorch Conv2d layout (OIHW).
    weight = 0.1 * jax.random.normal(kw, (Cout, Cin, 3, 3), dtype=jnp.float32)
    bias = 0.1 * jax.random.normal(kb, (Cout,), dtype=jnp.float32)

    ref = jax.block_until_ready(_reference_conv3x3(x, weight, bias, use_refl=True))

    # Exact path: f32 matmul operands.
    out_f32 = jax.block_until_ready(
        conv3x3_pallas(x, weight, bias, use_refl=True, compute_dtype=jnp.float32))
    assert out_f32.shape == (N, Cout, H, W)
    assert jnp.allclose(out_f32, ref, atol=1e-4, rtol=1e-4), float(
        jnp.max(jnp.abs(out_f32 - ref)))

    # Default path: bf16 operands (half the DMA bytes, MXU bf16 rate), f32 accum.
    out_bf16 = jax.block_until_ready(
        conv3x3_pallas(x, weight, bias, use_refl=True))
    assert out_bf16.shape == (N, Cout, H, W)
    assert jnp.allclose(out_bf16, ref, atol=5e-2, rtol=5e-2), float(
        jnp.max(jnp.abs(out_bf16 - ref)))

    print("KERNEL_OK")
</pallas_src>

<mosaic_0001>
module attributes {stable_mosaic.version = 11 : i64} {
  func.func @_conv3x3_kernel(%arg0: i32, %arg1: i32, %arg2: memref<1x1x8x512xf32, #tpu.memory_space<vmem>>, %arg3: memref<8x72xf32, #tpu.memory_space<vmem>>, %arg4: memref<8x1xf32, #tpu.memory_space<vmem>>, %arg5: memref<1x1x8x384xf32, #tpu.memory_space<vmem>>) attributes {dimension_semantics = [#tpu.dimension_semantics<parallel>, #tpu.dimension_semantics<parallel>], iteration_bounds = array<i64: 2, 1>, scalar_prefetch = 0 : i64, scratch_operands = 0 : i64, tpu.core_type = #tpu.core_type<tc>, window_params = [{transform_indices = @transform_0, window_bounds = array<i64: 1, 1, 8, 512>}, {pipeline_mode = #tpu.pipeline_mode<synchronous>, transform_indices = @transform_1, window_bounds = array<i64: 8, 72>}, {pipeline_mode = #tpu.pipeline_mode<synchronous>, transform_indices = @transform_2, window_bounds = array<i64: 8, 1>}, {transform_indices = @transform_3, window_bounds = array<i64: 1, 1, 8, 384>}]} {
    %c0 = arith.constant 0 : index
    %c0_0 = arith.constant 0 : index
    %c0_1 = arith.constant 0 : index
    %c0_2 = arith.constant 0 : index
    %0 = vector.load %arg2[%c0, %c0_0, %c0_1, %c0_2] : memref<1x1x8x512xf32, #tpu.memory_space<vmem>>, vector<1x1x8x512xf32>
    %1 = vector.shape_cast %0 : vector<1x1x8x512xf32> to vector<8x512xf32>
    %2 = vector.extract_strided_slice %1 {offsets = [0, 0], sizes = [8, 384], strides = [1, 1]} : vector<8x512xf32> to vector<8x384xf32>
    %3 = vector.extract_strided_slice %1 {offsets = [0, 1], sizes = [8, 384], strides = [1, 1]} : vector<8x512xf32> to vector<8x384xf32>
    %4 = vector.extract_strided_slice %1 {offsets = [0, 2], sizes = [8, 384], strides = [1, 1]} : vector<8x512xf32> to vector<8x384xf32>
    %5 = vector.extract_strided_slice %1 {offsets = [0, 18], sizes = [8, 384], strides = [1, 1]} : vector<8x512xf32> to vector<8x384xf32>
    %6 = vector.extract_strided_slice %1 {offsets = [0, 19], sizes = [8, 384], strides = [1, 1]} : vector<8x512xf32> to vector<8x384xf32>
    %7 = vector.extract_strided_slice %1 {offsets = [0, 20], sizes = [8, 384], strides = [1, 1]} : vector<8x512xf32> to vector<8x384xf32>
    %8 = vector.extract_strided_slice %1 {offsets = [0, 36], sizes = [8, 384], strides = [1, 1]} : vector<8x512xf32> to vector<8x384xf32>
    %9 = vector.extract_strided_slice %1 {offsets = [0, 37], sizes = [8, 384], strides = [1, 1]} : vector<8x512xf32> to vector<8x384xf32>
    %10 = vector.extract_strided_slice %1 {offsets = [0, 38], sizes = [8, 384], strides = [1, 1]} : vector<8x512xf32> to vector<8x384xf32>
    %11 = tpu.concatenate %2, %3, %4, %5, %6, %7, %8, %9, %10 in 0 : vector<8x384xf32>, vector<8x384xf32>, vector<8x384xf32>, vector<8x384xf32>, vector<8x384xf32>, vector<8x384xf32>, vector<8x384xf32>, vector<8x384xf32>, vector<8x384xf32> -> vector<72x384xf32>
    %c0_3 = arith.constant 0 : index
    %c0_4 = arith.constant 0 : index
    %12 = vector.load %arg3[%c0_3, %c0_4] : memref<8x72xf32, #tpu.memory_space<vmem>>, vector<8x72xf32>
    %cst = arith.constant dense<0.000000e+00> : vector<8x384xf32>
    %13 = tpu.matmul %12, %11, %cst {dimension_numbers = #tpu.dot_dimension_numbers<[1], [0], [0], [1], [0, 0, 1, 1], [], []>} : vector<8x72xf32>, vector<72x384xf32>, vector<8x384xf32> -> vector<8x384xf32>
    %c0_5 = arith.constant 0 : index
    %c0_6 = arith.constant 0 : index
    %14 = vector.load %arg4[%c0_5, %c0_6] : memref<8x1xf32, #tpu.memory_space<vmem>>, vector<8x1xf32>
    %15 = vector.broadcast %14 : vector<8x1xf32> to vector<8x384xf32>
    %16 = arith.addf %13, %15 : vector<8x384xf32>
    %c0_7 = arith.constant 0 : index
    %c0_8 = arith.constant 0 : index
    %c0_9 = arith.constant 0 : index
    %c0_10 = arith.constant 0 : index
    %17 = vector.load %arg5[%c0_7, %c0_8, %c0_9, %c0_10] : memref<1x1x8x384xf32, #tpu.memory_space<vmem>>, vector<1x1x8x384xf32>
    %18 = vector.shape_cast %17 : vector<1x1x8x384xf32> to vector<8x384xf32>
    %19 = vector.shape_cast %16 : vector<8x384xf32> to vector<1x1x8x384xf32>
    tpu.vector_store %arg5[%c0_7, %c0_8, %c0_9, %c0_10], %19 {strides = array<i32>} : memref<1x1x8x384xf32, #tpu.memory_space<vmem>>, vector<1x1x8x384xf32>,
    return
  }
  func.func @transform_0(%arg0: i32, %arg1: i32) -> (i32, i32, i32, i32) {
    %c0_i32 = arith.constant 0 : i32
    %c0_i32_0 = arith.constant 0 : i32
    %c0_i32_1 = arith.constant 0 : i32
    return %arg0, %arg1, %c0_i32, %c0_i32_0 : i32, i32, i32, i32
  }
  func.func @transform_1(%arg0: i32, %arg1: i32) -> (i32, i32) {
    %c0_i32 = arith.constant 0 : i32
    %c0_i32_0 = arith.constant 0 : i32
    %c0_i32_1 = arith.constant 0 : i32
    return %c0_i32, %c0_i32_0 : i32, i32
  }
  func.func @transform_2(%arg0: i32, %arg1: i32) -> (i32, i32) {
    %c0_i32 = arith.constant 0 : i32
    %c0_i32_0 = arith.constant 0 : i32
    %c0_i32_1 = arith.constant 0 : i32
    return %c0_i32, %c0_i32_0 : i32, i32
  }
  func.func @transform_3(%arg0: i32, %arg1: i32) -> (i32, i32, i32, i32) {
    %c0_i32 = arith.constant 0 : i32
    %c0_i32_0 = arith.constant 0 : i32
    %c0_i32_1 = arith.constant 0 : i32
    return %arg0, %arg1, %c0_i32, %c0_i32_0 : i32, i32, i32, i32
  }
}

</mosaic_0001>

<llo_original>
// kernel: tpu_custom_call.1
$region0: #{tpu_custom_call.1}
  #allocation0 [shape = 'u32[]', space=smem, size = 0x4, offset = 0x4, fixed_abs, tag = 'smem constant byte address 0x4 - core index']
  #allocation1 [shape = 'u32[144,128]{1,0:T(1,128)}', space=vmem, size = 0x12000, scoped, tag = 'internal scratch']
  %s0 = inlined_call_operand.hbm [shape: f32[2,1,8,512], index: 0, kind: input, shape index: {}]
  %s1 = inlined_call_operand.vmem [shape: f32[8,72], index: 1, kind: input, shape index: {}]
  %s2 = inlined_call_operand.vmem [shape: f32[8,1], index: 2, kind: input, shape index: {}]
  %s3 = inlined_call_operand.hbm [shape: f32[2,1,8,384], index: 3, kind: output, shape index: {}]
  %s4 = sld [smem:[#allocation0]]
  $region49: #{tpu_custom_call.1} parent=0
    _
  %s6 = ssub.s32 1, %s4
  %s7 = scalar_select 0, %s6, %s4
  $region1: #{tpu_custom_call.1} parent=0
    #allocation2 [shape = 'u8[32768]{0}', space=vmem, size = 0x8000, scoped, tag = 'input window, operand 0']
    #allocation3 [shape = 's32[2]{0}', space=sflag, size = 0x8, scoped, tag = 'scoped memory for tpu_custom_call.1']
    #allocation4 [shape = 's32[2]{0}', space=sflag, size = 0x8, scoped, tag = 'scoped memory for tpu_custom_call.1']
    #allocation5 [shape = 'u8[24576]{0}', space=vmem, size = 0x6000, scoped, tag = 'output window, operand 0']
    %8 = vsyncpa [#allocation3], 0
    %s9 = scalar_lea.sflag [#allocation3], 1
    %10 = vsyncpa %s9, 0
    %11 = vsyncpa [#allocation4], 0
    %s12 = scalar_lea.sflag [#allocation4], 1
    %13 = vsyncpa %s12, 0
    loop: start=0, step=1, limit=4
    $region2: #{tpu_custom_call.1} parent=1 // loop_pre_header
      _
    $region3: #{tpu_custom_call.1} parent=1 // loop_header
      %s15 = sphi 0, %s19
      %p16 = scmp.ge.s32.totalorder %s15, 4
      %s22 = sphi 0, %s34
      %s23 = sphi 0, %s30
      %s24 = sphi 0, %s22
      %s25 = sphi 0, %s23
      %s26 = sphi 0, %s24
      %s27 = sphi 0, %s25
      %s39 = sphi 0, %s41
      %s42 = sphi 0, %s39
      %s43 = sphi 0, %s42
      %s59 = sphi 0, %s43
      %s63 = sphi 0, %s63
      %s65 = sphi 0, %s63
      %s66 = sphi 0, %s65
      %s80 = sphi 0, %s66
      %s84 = sphi 0, %s84
      %s86 = sphi 0, %s84
      %s87 = sphi 0, %s86
      %s101 = sphi 0, %s87
      %s109 = sphi 0, %s111
      %s112 = sphi 0, %s109
      %s113 = sphi 0, %s112
      %s129 = sphi 0, %s113
    $region4: #{tpu_custom_call.1} parent=1 // loop_header_branch
      %18 = sbr.rel (%p16) target = $region8
    $region5: #{tpu_custom_call.1} parent=1 // loop_body
      %s20 = ssub.s32 %s15, 1
      %s21 = ssub.s32 %s15, 2
      %s28 = sadd.s32 1, %s23
      %p29 = scmp.ge.s32.totalorder %s28, 1
      %s30 = scalar_select %p29, 0, %s28
      %s31 = sadd.s32 1, %s22
      %s32 = scalar_select %p29, %s31, %s22
      %p33 = scmp.ge.s32.totalorder %s32, 2
      %s34 = scalar_select %p33, 0, %s32
      %s35 = ssub.s32 %s22, %s34
      %s36 = ssub.s32 %s23, %s30
      %s37 = sor.u32 %s35, %s36
      %p38 = scmp.eq.s32.totalorder %s37, 0
      %s40 = sadd.s32 %s39, 1
      %s41 = scalar_select %p38, %s39, %s40
      %p44 = pneg %p38
      %p45 = scmp.eq.s32.totalorder %s15, 1
      %p46 = por %p44, %p45
      %p47 = scmp.ne.s32.totalorder %s39, %s42
      %p48 = scmp.eq.s32.totalorder %s15, 0
      %p49 = por %p47, %p48
      %p50 = scmp.ne.s32.totalorder %s39, %s42
      %p51 = scmp.eq.s32.totalorder %s20, 1
      %p52 = por %p50, %p51
      %p53 = scmp.ne.s32.totalorder %s42, %s43
      %p54 = scmp.eq.s32.totalorder %s20, 0
      %p55 = por %p53, %p54
      %p56 = scmp.ne.s32.totalorder %s42, %s43
      %p57 = scmp.eq.s32.totalorder %s21, 1
      %p58 = por %p56, %p57
      %p60 = scmp.ne.s32.totalorder %s43, %s59
      %p61 = scmp.eq.s32.totalorder %s21, 0
      %p62 = por %p60, %p61
      %s64 = sadd.s32 %s63, 1
      %p67 = scmp.eq.s32.totalorder %s15, 1
      %p68 = scmp.ne.s32.totalorder %s63, %s65
      %p69 = scmp.eq.s32.totalorder %s15, 0
      %p70 = por %p68, %p69
      %p71 = scmp.ne.s32.totalorder %s63, %s65
      %p72 = scmp.eq.s32.totalorder %s20, 1
      %p73 = por %p71, %p72
      %p74 = scmp.ne.s32.totalorder %s65, %s66
      %p75 = scmp.eq.s32.totalorder %s20, 0
      %p76 = por %p74, %p75
      %p77 = scmp.ne.s32.totalorder %s65, %s66
      %p78 = scmp.eq.s32.totalorder %s21, 1
      %p79 = por %p77, %p78
      %p81 = scmp.ne.s32.totalorder %s66, %s80
      %p82 = scmp.eq.s32.totalorder %s21, 0
      %p83 = por %p81, %p82
      %s85 = sadd.s32 %s84, 1
      %p88 = scmp.eq.s32.totalorder %s15, 1
      %p89 = scmp.ne.s32.totalorder %s84, %s86
      %p90 = scmp.eq.s32.totalorder %s15, 0
      %p91 = por %p89, %p90
      %p92 = scmp.ne.s32.totalorder %s84, %s86
      %p93 = scmp.eq.s32.totalorder %s20, 1
      %p94 = por %p92, %p93
      %p95 = scmp.ne.s32.totalorder %s86, %s87
      %p96 = scmp.eq.s32.totalorder %s20, 0
      %p97 = por %p95, %p96
      %p98 = scmp.ne.s32.totalorder %s86, %s87
      %p99 = scmp.eq.s32.totalorder %s21, 1
      %p100 = por %p98, %p99
      %p102 = scmp.ne.s32.totalorder %s87, %s101
      %p103 = scmp.eq.s32.totalorder %s21, 0
      %p104 = por %p102, %p103
      %s105 = ssub.s32 %s22, %s34
      %s106 = ssub.s32 %s23, %s30
      %s107 = sor.u32 %s105, %s106
      %p108 = scmp.eq.s32.totalorder %s107, 0
      %s110 = sadd.s32 %s109, 1
      %s111 = scalar_select %p108, %s109, %s110
      %p114 = pneg %p108
      %p115 = scmp.eq.s32.totalorder %s15, 1
      %p116 = por %p114, %p115
      %p117 = scmp.ne.s32.totalorder %s109, %s112
      %p118 = scmp.eq.s32.totalorder %s15, 0
      %p119 = por %p117, %p118
      %p120 = scmp.ne.s32.totalorder %s109, %s112
      %p121 = scmp.eq.s32.totalorder %s20, 1
      %p122 = por %p120, %p121
      %p123 = scmp.ne.s32.totalorder %s112, %s113
      %p124 = scmp.eq.s32.totalorder %s20, 0
      %p125 = por %p123, %p124
      %p126 = scmp.ne.s32.totalorder %s112, %s113
      %p127 = scmp.eq.s32.totalorder %s21, 1
      %p128 = por %p126, %p127
      %p130 = scmp.ne.s32.totalorder %s113, %s129
      %p131 = scmp.eq.s32.totalorder %s21, 0
      %p132 = por %p130, %p131
      %p133 = scmp.le.s32.totalorder 1, %s15
      %p134 = scmp.lt.s32.totalorder %s15, 3
      %p135 = pnand %p133, %p134
      %p136 = pneg %p135
      // Predicated region
      $region9: #{tpu_custom_call.1} parent=5 // pred_check
        _
      $region10: #{tpu_custom_call.1} parent=5 // pred_check_branch
        %138 = sbr.rel (%p135) target = $region12
      $region11: #{tpu_custom_call.1} parent=5 // pred_region
        %s139 = ssub.s32 %s15, 1
        // Predicated region
        $region13: #{tpu_custom_call.1} parent=11 // pred_check
          %p140 = pneg %p76
        $region14: #{tpu_custom_call.1} parent=11 // pred_check_branch
          %142 = sbr.rel (%p140) target = $region16
        $region15: #{tpu_custom_call.1} parent=11 // pred_region
          _
        $region16: #{tpu_custom_call.1} parent=11 // pred_fallthru
          _
        // Predicated region
        $region17: #{tpu_custom_call.1} parent=11 // pred_check
          %p143 = pneg %p97
        $region18: #{tpu_custom_call.1} parent=11 // pred_check_branch
          %145 = sbr.rel (%p143) target = $region20
        $region19: #{tpu_custom_call.1} parent=11 // pred_region
          _
        $region20: #{tpu_custom_call.1} parent=11 // pred_fallthru
          _
      $region12: #{tpu_custom_call.1} parent=5 // pred_fallthru
        _
      %p146 = scmp.lt.s32.totalorder %s15, 2
      // Predicated region
      $region21: #{tpu_custom_call.1} parent=5 // pred_check
        %p147 = pneg %p146
      $region22: #{tpu_custom_call.1} parent=5 // pred_check_branch
        %149 = sbr.rel (%p147) target = $region24
      $region23: #{tpu_custom_call.1} parent=5 // pred_region
        // Predicated region
        $region25: #{tpu_custom_call.1} parent=23 // pred_check
          %p150 = pneg %p49
        $region26: #{tpu_custom_call.1} parent=23 // pred_check_branch
          %152 = sbr.rel (%p150) target = $region28
        $region27: #{tpu_custom_call.1} parent=23 // pred_region
          %s153 = sand.u32 %s39, 1
          %s154 = scalar_lea.sflag [#allocation3], %s153
          %s155 = sand.u32 %s39, 1
          %s156 = smul.addr %s155, 32
          %s157 = scalar_lea.vmem [#allocation2], %s156
          %s159 = ssub.s32 512, 512
          %160 = vsyncadd %s154, %s159
          %s161 = smul.addr %s23, 4
          %s162 = smul.addr %s22, 4
          %s163 = sadd.s32 %s161, %s162
          %s164 = smul.addr %s163, 128
          %s165 = scalar_lea.hbm %s0, %s164
          %s167 = sshll.u32 %s157, 4
          %s168 = int_to_ptr.vmem [resolvable:$true] %s167
          %170 = dma.hbm_to_vmem [thread:$0]  %s165, 512, %s168, %s154
        $region28: #{tpu_custom_call.1} parent=23 // pred_fallthru
          _
      $region24: #{tpu_custom_call.1} parent=5 // pred_fallthru
        _
      %p171 = scmp.le.s32.totalorder 1, %s15
      %p172 = scmp.lt.s32.totalorder %s15, 3
      %p173 = pnand %p171, %p172
      %p174 = pneg %p173
      // Predicated region
      $region29: #{tpu_custom_call.1} parent=5 // pred_check
        _
      $region30: #{tpu_custom_call.1} parent=5 // pred_check_branch
        %176 = sbr.rel (%p173) target = $region32
      $region31: #{tpu_custom_call.1} parent=5 // pred_region
        %s177 = ssub.s32 %s15, 1
        %s178 = sand.u32 %s42, 1
        %s179 = scalar_lea.sflag [#allocation3], %s178
        %s180 = sand.u32 %s42, 1
        %s181 = smul.addr %s180, 32
        %s182 = scalar_lea.vmem [#allocation2], %s181
        // Predicated region
        $region33: #{tpu_custom_call.1} parent=31 // pred_check
          %p183 = pneg %p55
        $region34: #{tpu_custom_call.1} parent=31 // pred_check_branch
          %185 = sbr.rel (%p183) target = $region36
        $region35: #{tpu_custom_call.1} parent=31 // pred_region
          %186 = dma.done %s179, 512
        $region36: #{tpu_custom_call.1} parent=31 // pred_fallthru
          _
        %s187 = sand.u32 %s42, 1
        %s188 = scalar_lea.sflag [#allocation3], %s187
        %s189 = sand.u32 %s42, 1
        %s190 = smul.addr %s189, 32
        %s191 = scalar_lea.vmem [#allocation2], %s190
        %p192 = pneg %p55
        %p193 = pneg %p52
        %p194 = pneg %p76
        %p195 = pneg %p73
        %p196 = pneg %p97
        %p197 = pneg %p94
        %p198 = pneg %p125
        %p199 = pneg %p122
        %s200 = sand.u32 %s112, 1
        %s201 = scalar_lea.sflag [#allocation4], %s200
        %s202 = sand.u32 %s112, 1
        %s203 = smul.addr %s202, 24
        %s204 = scalar_lea.vmem [#allocation5], %s203
        %v205 = vld [vmem:[%s182] sm:$0xff]
        %v206 = vld [vmem:[%s182 + $0x8] sm:$0xff]
        %v207 = vld [vmem:[%s182 + $0x10] sm:$0xff]
        %v208 = vld [vmem:[%s182 + $0x18] sm:$0xff]
        %213 = vrot.lane.b32.xlu0 %v205, 127
        %v214 = vpop.permute.xlu0 %213
        %215 = vrot.lane.b32.xlu0 %v206, 127
        %v216 = vpop.permute.xlu0 %215
        %217 = vrot.lane.b32.xlu0 %v207, 127
        %v218 = vpop.permute.xlu0 %217
        %219 = vrot.lane.b32.xlu0 %v208, 127
        %v220 = vpop.permute.xlu0 %219
        %vm221 = vcmask 1039360
        %v222 = vsel %vm221, %v214, %v216
        %v223 = vsel %vm221, %v216, %v218
        %v224 = vsel %vm221, %v218, %v220
        %228 = vrot.lane.b32.xlu0 %v205, 126
        %v229 = vpop.permute.xlu0 %228
        %230 = vrot.lane.b32.xlu0 %v206, 126
        %v231 = vpop.permute.xlu0 %230
        %232 = vrot.lane.b32.xlu0 %v207, 126
        %v233 = vpop.permute.xlu0 %232
        %234 = vrot.lane.b32.xlu0 %v208, 126
        %v235 = vpop.permute.xlu0 %234
        %vm236 = vcmask 1031168
        %v237 = vsel %vm236, %v229, %v231
        %v238 = vsel %vm236, %v231, %v233
        %v239 = vsel %vm236, %v233, %v235
        %243 = vrot.lane.b32.xlu0 %v205, 110
        %v244 = vpop.permute.xlu0 %243
        %245 = vrot.lane.b32.xlu0 %v206, 110
        %v246 = vpop.permute.xlu0 %245
        %247 = vrot.lane.b32.xlu0 %v207, 110
        %v248 = vpop.permute.xlu0 %247
        %249 = vrot.lane.b32.xlu0 %v208, 110
        %v250 = vpop.permute.xlu0 %249
        %vm251 = vcmask 900096
        %v252 = vsel %vm251, %v244, %v246
        %v253 = vsel %vm251, %v246, %v248
        %v254 = vsel %vm251, %v248, %v250
        %258 = vrot.lane.b32.xlu0 %v205, 109
        %v259 = vpop.permute.xlu0 %258
        %260 = vrot.lane.b32.xlu0 %v206, 109
        %v261 = vpop.permute.xlu0 %260
        %262 = vrot.lane.b32.xlu0 %v207, 109
        %v263 = vpop.permute.xlu0 %262
        %264 = vrot.lane.b32.xlu0 %v208, 109
        %v265 = vpop.permute.xlu0 %264
        %vm266 = vcmask 891904
        %v267 = vsel %vm266, %v259, %v261
        %v268 = vsel %vm266, %v261, %v263
        %v269 = vsel %vm266, %v263, %v265
        %273 = vrot.lane.b32.xlu0 %v205, 108
        %v274 = vpop.permute.xlu0 %273
        %275 = vrot.lane.b32.xlu0 %v206, 108
        %v276 = vpop.permute.xlu0 %275
        %277 = vrot.lane.b32.xlu0 %v207, 108
        %v278 = vpop.permute.xlu0 %277
        %279 = vrot.lane.b32.xlu0 %v208, 108
        %v280 = vpop.permute.xlu0 %279
        %vm281 = vcmask 883712
        %v282 = vsel %vm281, %v274, %v276
        %v283 = vsel %vm281, %v276, %v278
        %v284 = vsel %vm281, %v278, %v280
        %288 = vrot.lane.b32.xlu0 %v205, 92
        %v289 = vpop.permute.xlu0 %288
        %290 = vrot.lane.b32.xlu0 %v206, 92
        %v291 = vpop.permute.xlu0 %290
        %292 = vrot.lane.b32.xlu0 %v207, 92
        %v293 = vpop.permute.xlu0 %292
        %294 = vrot.lane.b32.xlu0 %v208, 92
        %v295 = vpop.permute.xlu0 %294
        %vm296 = vcmask 752640
        %v297 = vsel %vm296, %v289, %v291
        %v298 = vsel %vm296, %v291, %v293
        %v299 = vsel %vm296, %v293, %v295
        %303 = vrot.lane.b32.xlu0 %v205, 91
        %v304 = vpop.permute.xlu0 %303
        %305 = vrot.lane.b32.xlu0 %v206, 91
        %v306 = vpop.permute.xlu0 %305
        %307 = vrot.lane.b32.xlu0 %v207, 91
        %v308 = vpop.permute.xlu0 %307
        %309 = vrot.lane.b32.xlu0 %v208, 91
        %v310 = vpop.permute.xlu0 %309
        %vm311 = vcmask 744448
        %v312 = vsel %vm311, %v304, %v306
        %v313 = vsel %vm311, %v306, %v308
        %v314 = vsel %vm311, %v308, %v310
        %318 = vrot.lane.b32.xlu0 %v205, 90
        %v319 = vpop.permute.xlu0 %318
        %320 = vrot.lane.b32.xlu0 %v206, 90
        %v321 = vpop.permute.xlu0 %320
        %322 = vrot.lane.b32.xlu0 %v207, 90
        %v323 = vpop.permute.xlu0 %322
        %324 = vrot.lane.b32.xlu0 %v208, 90
        %v325 = vpop.permute.xlu0 %324
        %vm326 = vcmask 736256
        %v327 = vsel %vm326, %v319, %v321
        %v328 = vsel %vm326, %v321, %v323
        %v329 = vsel %vm326, %v323, %v325
        %v333 = vld [vmem:[%s1] sm:$0xff]
        %v334 = vld [vmem:[%s2] sm:$0xff]
        %336 = vset.pattern.permute.xlu0 0
        %337 = vperm.xlu0 %336, %v334
        %v338 = vpop.permute.xlu0 %337
        %vm340 = vcmask 588800
        %v342 = vsel %vm340, %v333, 0
        %344 = vmatprep.subr.mxu0 %v206
        %345 = vmatpush1.msra.mxu0 %v205
        %346 = vmatprep.subr.mxu0 %v223
        %347 = vmatpush1.msra.mxu0 %v222
        %348 = vmatprep.subr.mxu0 %v238
        %349 = vmatpush1.msra.mxu0 %v237
        %350 = vmatprep.subr.mxu0 %v253
        %351 = vmatpush1.msra.mxu0 %v252
        %352 = vmatprep.subr.mxu0 %v268
        %353 = vmatpush1.msra.mxu0 %v267
        %354 = vmatprep.subr.mxu0 %v283
        %355 = vmatpush1.msra.mxu0 %v282
        %356 = vmatprep.subr.mxu0 %v298
        %357 = vmatpush1.msra.mxu0 %v297
        %358 = vmatprep.subr.mxu0 %v313
        %359 = vmatpush1.msra.mxu0 %v312
        %360 = vmatprep.subr.mxu0 %v328
        %361 = vmatpush1.msra.mxu0 %v327
        %362 = vmatprep.subr.mxu0 0.0
        %363 = vmatpush1.msra.mxu0 0.0
        %364 = vmatprep.subr.mxu0 0.0
        %365 = vmatpush1.msra.mxu0 0.0
        %366 = vmatprep.subr.mxu0 0.0
        %367 = vmatpush1.msra.mxu0 0.0
        %368 = vmatprep.subr.mxu0 0.0
        %369 = vmatpush1.msra.mxu0 0.0
        %370 = vmatprep.subr.mxu0 0.0
        %371 = vmatpush1.msra.mxu0 0.0
        %372 = vmatprep.subr.mxu0 0.0
        %373 = vmatpush1.msra.mxu0 0.0
        %374 = vmatprep.subr.mxu0 0.0
        %375 = vmatpush1.msra.mxu0 0.0
        %376 = vmatprep.subr.mxu0 0.0
        %377 = vmatpush1.msra.mxu0 0.0
        %378 = vmatprep.subr.mxu0 0.0
        %379 = vmatpush1.msra.mxu0 0.0
        %380 = vmatprep.subr.mxu0 0.0
        %381 = vmatpush1.msra.mxu0 0.0
        %382 = vmatprep.subr.mxu0 0.0
        %383 = vmatpush1.msra.mxu0 0.0
        %384 = vmatprep.subr.mxu0 0.0
        %385 = vmatpush1.msra.mxu0 0.0
        %386 = vmatprep.subr.mxu0 0.0
        %387 = vmatpush1.msra.mxu0 0.0
        %388 = vmatprep.subr.mxu0 0.0
        %389 = vmatpush1.msra.mxu0 0.0
        %390 = vmatprep.subr.mxu0 0.0
        %391 = vmatpush1.msra.mxu0 0.0
        %392 = vmatprep.subr.mxu0 0.0
        %393 = vmatpush1.msra.mxu0 0.0
        %394 = vmatprep.subr.mxu0 0.0
        %395 = vmatpush1.msra.mxu0 0.0
        %396 = vmatprep.subr.mxu0 0.0
        %397 = vmatpush1.msra.mxu0 0.0
        %398 = vmatprep.subr.mxu0 0.0
        %399 = vmatpush1.msra.mxu0 0.0
        %400 = vmatprep.subr.mxu0 0.0
        %401 = vmatpush1.msra.mxu0 0.0
        %402 = vmatprep.subr.mxu0 0.0
        %403 = vmatpush1.msra.mxu0 0.0
        %404 = vmatprep.subr.mxu0 0.0
        %405 = vmatpush1.msra.mxu0 0.0
        %406 = vmatprep.subr.mxu0 0.0
        %407 = vmatpush1.msra.mxu0 0.0
        %408 = vmatprep.mubr.f32.mxu0 0.0
        %409 = vmatmul.mubr.f32.gmra.mrb[0].mxu0 %v342
        %v410 = vpop.f32.mrb[0].mxu0
        %v411 = vadd.f32 %v338, %v410
        %v412 = vpop.f32.mrb[0].mxu0
        %v413 = vadd.f32 %v338, %v412
        %414 = vdwg.mxu0
        %415 = vmatprep.subr.mxu0 0.0
        %416 = vmatpush1.msra.mxu0 %v207
        %417 = vmatprep.subr.mxu0 0.0
        %418 = vmatpush1.msra.mxu0 %v224
        %419 = vmatprep.subr.mxu0 0.0
        %420 = vmatpush1.msra.mxu0 %v239
        %421 = vmatprep.subr.mxu0 0.0
        %422 = vmatpush1.msra.mxu0 %v254
        %423 = vmatprep.subr.mxu0 0.0
        %424 = vmatpush1.msra.mxu0 %v269
        %425 = vmatprep.subr.mxu0 0.0
        %426 = vmatpush1.msra.mxu0 %v284
        %427 = vmatprep.subr.mxu0 0.0
        %428 = vmatpush1.msra.mxu0 %v299
        %429 = vmatprep.subr.mxu0 0.0
        %430 = vmatpush1.msra.mxu0 %v314
        %431 = vmatprep.subr.mxu0 0.0
        %432 = vmatpush1.msra.mxu0 %v329
        %433 = vmatprep.subr.mxu0 0.0
        %434 = vmatpush1.msra.mxu0 0.0
        %435 = vmatprep.subr.mxu0 0.0
        %436 = vmatpush1.msra.mxu0 0.0
        %437 = vmatprep.subr.mxu0 0.0
        %438 = vmatpush1.msra.mxu0 0.0
        %439 = vmatprep.subr.mxu0 0.0
        %440 = vmatpush1.msra.mxu0 0.0
        %441 = vmatprep.subr.mxu0 0.0
        %442 = vmatpush1.msra.mxu0 0.0
        %443 = vmatprep.subr.mxu0 0.0
        %444 = vmatpush1.msra.mxu0 0.0
        %445 = vmatprep.subr.mxu0 0.0
        %446 = vmatpush1.msra.mxu0 0.0
        %447 = vmatprep.subr.mxu0 0.0
        %448 = vmatpush1.msra.mxu0 0.0
        %449 = vmatprep.subr.mxu0 0.0
        %450 = vmatpush1.msra.mxu0 0.0
        %451 = vmatprep.subr.mxu0 0.0
        %452 = vmatpush1.msra.mxu0 0.0
        %453 = vmatprep.subr.mxu0 0.0
        %454 = vmatpush1.msra.mxu0 0.0
        %455 = vmatprep.subr.mxu0 0.0
        %456 = vmatpush1.msra.mxu0 0.0
        %457 = vmatprep.subr.mxu0 0.0
        %458 = vmatpush1.msra.mxu0 0.0
        %459 = vmatprep.subr.mxu0 0.0
        %460 = vmatpush1.msra.mxu0 0.0
        %461 = vmatprep.subr.mxu0 0.0
        %462 = vmatpush1.msra.mxu0 0.0
        %463 = vmatprep.subr.mxu0 0.0
        %464 = vmatpush1.msra.mxu0 0.0
        %465 = vmatprep.subr.mxu0 0.0
        %466 = vmatpush1.msra.mxu0 0.0
        %467 = vmatprep.subr.mxu0 0.0
        %468 = vmatpush1.msra.mxu0 0.0
        %469 = vmatprep.subr.mxu0 0.0
        %470 = vmatpush1.msra.mxu0 0.0
        %471 = vmatprep.subr.mxu0 0.0
        %472 = vmatpush1.msra.mxu0 0.0
        %473 = vmatprep.subr.mxu0 0.0
        %474 = vmatpush1.msra.mxu0 0.0
        %475 = vmatprep.subr.mxu0 0.0
        %476 = vmatpush1.msra.mxu0 0.0
        %477 = vmatprep.subr.mxu0 0.0
        %478 = vmatpush1.msra.mxu0 0.0
        %479 = vmatprep.mubr.f32.mxu0 0.0
        %480 = vmatmul.mubr.f32.gmra.mrb[0].mxu0 %v342
        %v481 = vpop.f32.mrb[0].mxu0
        %v482 = vadd.f32 %v338, %v481
        %v483 = vpop.f32.mrb[0].mxu0
        %484 = vdwg.mxu0
        %485 = vst [vmem:[%s204] sm:$0xff] %v411
        %486 = vst [vmem:[%s204 + $0x8] sm:$0xff] %v413
        %487 = vst [vmem:[%s204 + $0x10] sm:$0xff] %v482
        %s488 = sand.u32 %s112, 1
        %s489 = scalar_lea.sflag [#allocation4], %s488
        %s490 = sand.u32 %s112, 1
        %s491 = smul.addr %s490, 24
        %s492 = scalar_lea.vmem [#allocation5], %s491
        // Predicated region
        $region37: #{tpu_custom_call.1} parent=31 // pred_check
          %p493 = pneg %p122
        $region38: #{tpu_custom_call.1} parent=31 // pred_check_branch
          %495 = sbr.rel (%p493) target = $region40
        $region39: #{tpu_custom_call.1} parent=31 // pred_region
          %s497 = ssub.s32 384, 384
          %498 = vsyncadd %s489, %s497
          %s499 = smul.addr %s25, 3
          %s500 = smul.addr %s24, 3
          %s501 = sadd.s32 %s499, %s500
          %s502 = smul.addr %s501, 128
          %s503 = scalar_lea.hbm %s3, %s502
          %s505 = sshll.u32 %s492, 4
          %s506 = int_to_ptr.vmem [resolvable:$true] %s505
          %508 = dma.vmem_to_hbm [thread:$0]  %s506, 384, %s503, %s489
        $region40: #{tpu_custom_call.1} parent=31 // pred_fallthru
          _
      $region32: #{tpu_custom_call.1} parent=5 // pred_fallthru
        _
      %p509 = scmp.le.s32.totalorder 2, %s15
      // Predicated region
      $region41: #{tpu_custom_call.1} parent=5 // pred_check
        %p510 = pneg %p509
      $region42: #{tpu_custom_call.1} parent=5 // pred_check_branch
        %512 = sbr.rel (%p510) target = $region44
      $region43: #{tpu_custom_call.1} parent=5 // pred_region
        %s513 = ssub.s32 %s15, 2
        // Predicated region
        $region45: #{tpu_custom_call.1} parent=43 // pred_check
          %p514 = pneg %p128
        $region46: #{tpu_custom_call.1} parent=43 // pred_check_branch
          %516 = sbr.rel (%p514) target = $region48
        $region47: #{tpu_custom_call.1} parent=43 // pred_region
          %s517 = sand.u32 %s113, 1
          %s518 = scalar_lea.sflag [#allocation4], %s517
          %s519 = sand.u32 %s113, 1
          %s520 = smul.addr %s519, 24
          %s521 = scalar_lea.vmem [#allocation5], %s520
          %522 = dma.done %s518, 384
        $region48: #{tpu_custom_call.1} parent=43 // pred_fallthru
          _
      $region44: #{tpu_custom_call.1} parent=5 // pred_fallthru
        _
    $region6: #{tpu_custom_call.1} parent=1 // loop_footer
      %s19 = sadd.s32 1, %s15
    $region7: #{tpu_custom_call.1} parent=1 // loop_footer_branch
      %14 = sbr.rel target = $region3
    $region8: #{tpu_custom_call.1} parent=1 // loop_exit
      _
    %523 = vsyncpa [#allocation3], 1
    %s524 = scalar_lea.sflag [#allocation3], 1
    %525 = vsyncpa %s524, 1
    %526 = vsyncpa [#allocation4], 1
    %s527 = scalar_lea.sflag [#allocation4], 1
    %528 = vsyncpa %s527, 1

</llo_original>
